<compile_context>
chip_gen: v7x
topology: tpu7x:2x2x1
jax: 0.10.0
libtpu: 0.0.40
codegen_flags: <defaults>
</compile_context>

<pallas_src>
import jax
import jax.numpy as jnp
from jax.experimental import pallas as pl
from jax.experimental.pallas import tpu as pltpu

PAD = 128  # lane-dense width for activations / weights / output


def _make_fused_zencoder_kernel(n_layers: int):
    """Kernel computing the fused (mean ++ logvar) MLP in one pass.

    Refs: x (B, PAD), w_slab (n_layers, PAD, PAD), b_slab (n_layers, PAD),
    out (B, PAD).
    """

    def kernel(x_ref, w_ref, b_ref, out_ref):
        h = x_ref[...]  # (B, PAD) f32
        for li in range(n_layers):
            w = w_ref[li]                # (PAD, PAD), static leading index
            b = b_ref[li:li + 1, :]      # (1, PAD), broadcasts over batch
            h = jnp.dot(h, w, preferred_element_type=jnp.float32) + b
            if li < n_layers - 1:
                # nn.Sigmoid between hidden layers (not after final layer).
                # sigmoid(x) = 0.5 * tanh(x/2) + 0.5  -> tanh on EUP, no divide.
                h = 0.5 * jnp.tanh(0.5 * h) + 0.5
        out_ref[...] = h.astype(out_ref.dtype)

    return kernel


def init_mlp_params(key, input_dim, output_dim, hidden_dims):
    """Parameter init mirroring MLP.__init__.

    Weights: nn.init.normal_ (std=1).  Biases: PyTorch Linear default
    uniform(-1/sqrt(fan_in), 1/sqrt(fan_in)).  Weights are returned already
    transposed to (in_features, out_features) so the kernel does x @ W + b.
    """
    dims = [input_dim] + list(hidden_dims) + [output_dim]
    params = []
    for i in range(len(dims) - 1):
        fan_in, fan_out = dims[i], dims[i + 1]
        key, kw, kb = jax.random.split(key, 3)
        w = jax.random.normal(kw, (fan_in, fan_out), dtype=jnp.float32)
        bound = 1.0 / jnp.sqrt(jnp.float32(fan_in))
        b = jax.random.uniform(
            kb, (fan_out,), dtype=jnp.float32, minval=-bound, maxval=bound
        )
        params.append((w, b))
    return params, key


def pack_fused_params(mean_params, logvar_params, pad=PAD):
    """Builds the fused, zero-padded weight / bias slabs.

    Layer 0: W = concat([W_mean, W_logvar], axis=1)   (shared input)
    Layers 1..N-1: block-diagonal [[W_mean, 0], [0, W_logvar]]
    Everything zero-padded to (pad, pad) / (pad,) and stacked along layers.
    """
    n_layers = len(mean_params)
    assert len(logvar_params) == n_layers
    w_slab, b_slab = [], []
    for li in range(n_layers):
        wm, bm = mean_params[li]
        wl, bl = logvar_params[li]
        if li == 0:
            w_f = jnp.concatenate([wm, wl], axis=1)
        else:
            zm = jnp.zeros((wm.shape[0], wl.shape[1]), jnp.float32)
            zl = jnp.zeros((wl.shape[0], wm.shape[1]), jnp.float32)
            w_f = jnp.concatenate(
                [jnp.concatenate([wm, zm], axis=1),
                 jnp.concatenate([zl, wl], axis=1)],
                axis=0,
            )
        b_f = jnp.concatenate([bm.reshape(-1), bl.reshape(-1)])
        assert w_f.shape[0] <= pad and w_f.shape[1] <= pad, "dims exceed PAD"
        w_p = (
            jnp.zeros((pad, pad), jnp.float32)
            .at[: w_f.shape[0], : w_f.shape[1]]
            .set(w_f)
        )
        b_p = jnp.zeros((pad,), jnp.float32).at[: b_f.shape[0]].set(b_f)
        w_slab.append(w_p)
        b_slab.append(b_p)
    return jnp.stack(w_slab), jnp.stack(b_slab)


def zencoder_forward(x, mean_params, logvar_params):
    """Fused Pallas forward; returns (mean, logvar) like ZEncoder.forward."""
    n_layers = len(mean_params)
    batch, input_dim = x.shape
    output_dim = mean_params[-1][0].shape[1]
    assert input_dim <= PAD and 2 * output_dim <= PAD

    # Pad batch to a sublane multiple and the feature axis to full lane width.
    batch_p = ((batch + 7) // 8) * 8
    x_p = (
        jnp.zeros((batch_p, PAD), jnp.float32)
        .at[:batch, :input_dim]
        .set(x.astype(jnp.float32))
    )

    w_slab, b_slab = pack_fused_params(mean_params, logvar_params)

    vmem = pl.BlockSpec(memory_space=pltpu.MemorySpace.VMEM)
    out = pl.pallas_call(
        _make_fused_zencoder_kernel(n_layers),
        out_shape=jax.ShapeDtypeStruct((batch_p, PAD), jnp.float32),
        in_specs=[vmem, vmem, vmem],
        out_specs=vmem,
    )(x_p, w_slab, b_slab)

    # TODO(synk): if this encoder is invoked per task/context-set, stack those
    # calls and add a leading "parallel" grid axis (params untiled) to amortize
    # launch/DMA overhead and use both TensorCores on v7x.
    mean = out[:batch, :output_dim]
    logvar = out[:batch, output_dim:2 * output_dim]
    return mean, logvar


def zencoder_forward_ref(x, mean_params, logvar_params):
    """Pure-JAX reference (two separate MLPs, as in the PyTorch module)."""

    def mlp(h, params):
        for i, (w, b) in enumerate(params):
            h = h @ w + b
            if i < len(params) - 1:
                h = jax.nn.sigmoid(h)
        return h

    return mlp(x, mean_params), mlp(x, logvar_params)


if __name__ == "__main__":
    # Small shapes consistent with the module: batch=8, r-dim=32,
    # hidden_dims=[32, 32], latent z dim=16.
    batch = 8
    input_dim = 32
    hidden_dims = [32, 32]
    output_dim = 16

    key = jax.random.PRNGKey(0)
    key, kx = jax.random.split(key)
    x = jax.random.normal(kx, (batch, input_dim), dtype=jnp.float32)

    mean_params, key = init_mlp_params(key, input_dim, output_dim, hidden_dims)
    logvar_params, key = init_mlp_params(key, input_dim, output_dim, hidden_dims)

    mean, logvar = zencoder_forward(x, mean_params, logvar_params)
    mean = jax.block_until_ready(mean)
    logvar = jax.block_until_ready(logvar)

    mean_ref, logvar_ref = zencoder_forward_ref(x, mean_params, logvar_params)
    assert mean.shape == (batch, output_dim) and logvar.shape == (batch, output_dim)
    assert jnp.allclose(mean, mean_ref, atol=1e-4, rtol=1e-4)
    assert jnp.allclose(logvar, logvar_ref, atol=1e-4, rtol=1e-4)

    print("KERNEL_OK")
</pallas_src>

<mosaic_0001>
module attributes {stable_mosaic.version = 11 : i64} {
  func.func @kernel(%arg0: memref<8x128xf32, #tpu.memory_space<vmem>>, %arg1: memref<3x128x128xf32, #tpu.memory_space<vmem>>, %arg2: memref<3x128xf32, #tpu.memory_space<vmem>>, %arg3: memref<8x128xf32, #tpu.memory_space<vmem>>) attributes {dimension_semantics = [], scalar_prefetch = 0 : i64, scratch_operands = 0 : i64, tpu.core_type = #tpu.core_type<tc>} {
    %c0 = arith.constant 0 : index
    %c0_0 = arith.constant 0 : index
    %0 = vector.load %arg0[%c0, %c0_0] : memref<8x128xf32, #tpu.memory_space<vmem>>, vector<8x128xf32>
    %c0_1 = arith.constant 0 : index
    %c0_2 = arith.constant 0 : index
    %c0_3 = arith.constant 0 : index
    %1 = vector.load %arg1[%c0_1, %c0_2, %c0_3] : memref<3x128x128xf32, #tpu.memory_space<vmem>>, vector<1x128x128xf32>
    %2 = vector.shape_cast %1 : vector<1x128x128xf32> to vector<128x128xf32>
    %c0_4 = arith.constant 0 : index
    %c0_5 = arith.constant 0 : index
    %3 = vector.load %arg2[%c0_4, %c0_5] : memref<3x128xf32, #tpu.memory_space<vmem>>, vector<1x128xf32>
    %cst = arith.constant dense<0.000000e+00> : vector<8x128xf32>
    %4 = tpu.matmul %0, %2, %cst {dimension_numbers = #tpu.dot_dimension_numbers<[1], [0], [0], [1], [0, 0, 1, 1], [], []>} : vector<8x128xf32>, vector<128x128xf32>, vector<8x128xf32> -> vector<8x128xf32>
    %5 = vector.broadcast %3 : vector<1x128xf32> to vector<8x128xf32>
    %6 = arith.addf %4, %5 : vector<8x128xf32>
    %cst_6 = arith.constant 5.000000e-01 : f32
    %7 = vector.broadcast %cst_6 : f32 to vector<8x128xf32>
    %8 = arith.mulf %7, %6 : vector<8x128xf32>
    %9 = math.tanh %8 : vector<8x128xf32>
    %cst_7 = arith.constant 5.000000e-01 : f32
    %10 = vector.broadcast %cst_7 : f32 to vector<8x128xf32>
    %11 = arith.mulf %10, %9 : vector<8x128xf32>
    %cst_8 = arith.constant 5.000000e-01 : f32
    %12 = vector.broadcast %cst_8 : f32 to vector<8x128xf32>
    %13 = arith.addf %11, %12 : vector<8x128xf32>
    %c1 = arith.constant 1 : index
    %c0_9 = arith.constant 0 : index
    %c0_10 = arith.constant 0 : index
    %14 = vector.load %arg1[%c1, %c0_9, %c0_10] : memref<3x128x128xf32, #tpu.memory_space<vmem>>, vector<1x128x128xf32>
    %15 = vector.shape_cast %14 : vector<1x128x128xf32> to vector<128x128xf32>
    %c1_11 = arith.constant 1 : index
    %c0_12 = arith.constant 0 : index
    %16 = vector.load %arg2[%c1_11, %c0_12] : memref<3x128xf32, #tpu.memory_space<vmem>>, vector<1x128xf32>
    %cst_13 = arith.constant dense<0.000000e+00> : vector<8x128xf32>
    %17 = tpu.matmul %13, %15, %cst_13 {dimension_numbers = #tpu.dot_dimension_numbers<[1], [0], [0], [1], [0, 0, 1, 1], [], []>} : vector<8x128xf32>, vector<128x128xf32>, vector<8x128xf32> -> vector<8x128xf32>
    %18 = vector.broadcast %16 : vector<1x128xf32> to vector<8x128xf32>
    %19 = arith.addf %17, %18 : vector<8x128xf32>
    %cst_14 = arith.constant 5.000000e-01 : f32
    %20 = vector.broadcast %cst_14 : f32 to vector<8x128xf32>
    %21 = arith.mulf %20, %19 : vector<8x128xf32>
    %22 = math.tanh %21 : vector<8x128xf32>
    %cst_15 = arith.constant 5.000000e-01 : f32
    %23 = vector.broadcast %cst_15 : f32 to vector<8x128xf32>
    %24 = arith.mulf %23, %22 : vector<8x128xf32>
    %cst_16 = arith.constant 5.000000e-01 : f32
    %25 = vector.broadcast %cst_16 : f32 to vector<8x128xf32>
    %26 = arith.addf %24, %25 : vector<8x128xf32>
    %c2 = arith.constant 2 : index
    %c0_17 = arith.constant 0 : index
    %c0_18 = arith.constant 0 : index
    %27 = vector.load %arg1[%c2, %c0_17, %c0_18] : memref<3x128x128xf32, #tpu.memory_space<vmem>>, vector<1x128x128xf32>
    %28 = vector.shape_cast %27 : vector<1x128x128xf32> to vector<128x128xf32>
    %c2_19 = arith.constant 2 : index
    %c0_20 = arith.constant 0 : index
    %29 = vector.load %arg2[%c2_19, %c0_20] : memref<3x128xf32, #tpu.memory_space<vmem>>, vector<1x128xf32>
    %cst_21 = arith.constant dense<0.000000e+00> : vector<8x128xf32>
    %30 = tpu.matmul %26, %28, %cst_21 {dimension_numbers = #tpu.dot_dimension_numbers<[1], [0], [0], [1], [0, 0, 1, 1], [], []>} : vector<8x128xf32>, vector<128x128xf32>, vector<8x128xf32> -> vector<8x128xf32>
    %31 = vector.broadcast %29 : vector<1x128xf32> to vector<8x128xf32>
    %32 = arith.addf %30, %31 : vector<8x128xf32>
    %c0_22 = arith.constant 0 : index
    %c0_23 = arith.constant 0 : index
    %33 = vector.load %arg3[%c0_22, %c0_23] : memref<8x128xf32, #tpu.memory_space<vmem>>, vector<8x128xf32>
    tpu.vector_store %arg3[%c0_22, %c0_23], %32 {strides = array<i32>} : memref<8x128xf32, #tpu.memory_space<vmem>>, vector<8x128xf32>,
    return
  }
}

</mosaic_0001>

<llo_original>
// kernel: tpu_custom_call.1
$region0: #{tpu_custom_call.1}
  #allocation0 [shape = 'u32[]', space=smem, size = 0x4, offset = 0x4, fixed_abs, tag = 'smem constant byte address 0x4 - core index']
  #allocation1 [shape = 'u32[144,128]{1,0:T(1,128)}', space=vmem, size = 0x12000, scoped, tag = 'internal scratch']
  %s0 = inlined_call_operand.hbm [shape: f32[8,128], index: 0, kind: input, shape index: {}]
  %s1 = inlined_call_operand.hbm [shape: f32[3,128,128], index: 1, kind: input, shape index: {}]
  %s2 = inlined_call_operand.vmem [shape: f32[3,128], index: 2, kind: input, shape index: {}]
  %s3 = inlined_call_operand.hbm [shape: f32[8,128], index: 3, kind: output, shape index: {}]
  %s4 = sld [smem:[#allocation0]]
  $region30: #{tpu_custom_call.1} parent=0
    _
  %s6 = ssub.s32 1, %s4
  %s7 = scalar_select 0, %s6, %s4
  $region1: #{tpu_custom_call.1} parent=0
    #allocation2 [shape = 'u8[4096]{0}', space=vmem, size = 0x1000, scoped, tag = 'input window, operand 0, single buffered']
    #allocation3 [shape = 's32[1]{0}', space=sflag, size = 0x4, scoped, tag = 'scoped memory for tpu_custom_call.1']
    #allocation4 [shape = 's32[1]{0}', space=sflag, size = 0x4, scoped, tag = 'scoped memory for tpu_custom_call.1']
    #allocation5 [shape = 'u8[196608]{0}', space=vmem, size = 0x30000, scoped, tag = 'input window, operand 1, single buffered']
    #allocation6 [shape = 's32[1]{0}', space=sflag, size = 0x4, scoped, tag = 'scoped memory for tpu_custom_call.1']
    #allocation7 [shape = 'u8[4096]{0}', space=vmem, size = 0x1000, scoped, tag = 'output window, operand 0, single buffered']
    %8 = vsyncpa [#allocation3], 0
    %9 = vsyncpa [#allocation6], 0
    %10 = vsyncpa [#allocation4], 0
    // Predicated region
    $region2: #{tpu_custom_call.1} parent=1 // pred_check
      _
    $region3: #{tpu_custom_call.1} parent=1 // pred_check_branch
      %12 = sbr.rel (0) target = $region5
    $region4: #{tpu_custom_call.1} parent=1 // pred_region
      %s14 = ssub.s32 128, 128
      %15 = vsyncadd [#allocation3], %s14
      %s17 = sshll.u32 [#allocation2], 4
      %s18 = int_to_ptr.vmem [resolvable:$true] %s17
      %20 = dma.hbm_to_vmem [thread:$0]  %s0, 128, %s18, [#allocation3]
    $region5: #{tpu_custom_call.1} parent=1 // pred_fallthru
      _
    // Predicated region
    $region6: #{tpu_custom_call.1} parent=1 // pred_check
      _
    $region7: #{tpu_custom_call.1} parent=1 // pred_check_branch
      %22 = sbr.rel (0) target = $region9
    $region8: #{tpu_custom_call.1} parent=1 // pred_region
      %s24 = ssub.s32 6144, 6144
      %25 = vsyncadd [#allocation6], %s24
      %s26 = sshll.u32 [#allocation5], 4
      %s27 = int_to_ptr.vmem [resolvable:$true] %s26
      %32 = dma.hbm_to_vmem [thread:$0]  %s1, 6144, %s27, [#allocation6], 128, 128, 8
    $region9: #{tpu_custom_call.1} parent=1 // pred_fallthru
      _
    // Predicated region
    $region10: #{tpu_custom_call.1} parent=1 // pred_check
      _
    $region11: #{tpu_custom_call.1} parent=1 // pred_check_branch
      %34 = sbr.rel (0) target = $region13
    $region12: #{tpu_custom_call.1} parent=1 // pred_region
      _
    $region13: #{tpu_custom_call.1} parent=1 // pred_fallthru
      _
    // Predicated region
    $region14: #{tpu_custom_call.1} parent=1 // pred_check
      _
    $region15: #{tpu_custom_call.1} parent=1 // pred_check_branch
      %36 = sbr.rel (0) target = $region17
    $region16: #{tpu_custom_call.1} parent=1 // pred_region
      %37 = dma.done [#allocation3], 128
    $region17: #{tpu_custom_call.1} parent=1 // pred_fallthru
      _
    // Predicated region
    $region18: #{tpu_custom_call.1} parent=1 // pred_check
      _
    $region19: #{tpu_custom_call.1} parent=1 // pred_check_branch
      %39 = sbr.rel (0) target = $region21
    $region20: #{tpu_custom_call.1} parent=1 // pred_region
      %40 = dma.done [#allocation6], 6144
    $region21: #{tpu_custom_call.1} parent=1 // pred_fallthru
      _
    %v41 = vld [vmem:[#allocation2] sm:$0xff]
    %v42 = vld [vmem:[#allocation5] sm:$0xff]
    %v43 = vld [vmem:[#allocation5 + $0x8] sm:$0xff]
    %v44 = vld [vmem:[#allocation5 + $0x10] sm:$0xff]
    %v45 = vld [vmem:[#allocation5 + $0x18] sm:$0xff]
    %v46 = vld [vmem:[#allocation5 + $0x20] sm:$0xff]
    %v47 = vld [vmem:[#allocation5 + $0x28] sm:$0xff]
    %v48 = vld [vmem:[#allocation5 + $0x30] sm:$0xff]
    %v49 = vld [vmem:[#allocation5 + $0x38] sm:$0xff]
    %v50 = vld [vmem:[#allocation5 + $0x40] sm:$0xff]
    %v51 = vld [vmem:[#allocation5 + $0x48] sm:$0xff]
    %v52 = vld [vmem:[#allocation5 + $0x50] sm:$0xff]
    %v53 = vld [vmem:[#allocation5 + $0x58] sm:$0xff]
    %v54 = vld [vmem:[#allocation5 + $0x60] sm:$0xff]
    %v55 = vld [vmem:[#allocation5 + $0x68] sm:$0xff]
    %v56 = vld [vmem:[#allocation5 + $0x70] sm:$0xff]
    %v57 = vld [vmem:[#allocation5 + $0x78] sm:$0xff]
    %v58 = vld [vmem:[%s2] sm:$0x1]
    %v59 = vlaneseq
    %v60 = vshrl.u32 %v59, 7
    %v61 = vsub.s32 0, %v60
    %v62 = vrot.slane %v58, %v61
    %63 = vmatprep.subr.mxu0 0.0
    %64 = vmatpush1.msra.mxu0 %v42
    %65 = vmatprep.subr.mxu0 0.0
    %66 = vmatpush1.msra.mxu0 %v43
    %67 = vmatprep.subr.mxu0 0.0
    %68 = vmatpush1.msra.mxu0 %v44
    %69 = vmatprep.subr.mxu0 0.0
    %70 = vmatpush1.msra.mxu0 %v45
    %71 = vmatprep.subr.mxu0 0.0
    %72 = vmatpush1.msra.mxu0 %v46
    %73 = vmatprep.subr.mxu0 0.0
    %74 = vmatpush1.msra.mxu0 %v47
    %75 = vmatprep.subr.mxu0 0.0
    %76 = vmatpush1.msra.mxu0 %v48
    %77 = vmatprep.subr.mxu0 0.0
    %78 = vmatpush1.msra.mxu0 %v49
    %79 = vmatprep.subr.mxu0 0.0
    %80 = vmatpush1.msra.mxu0 %v50
    %81 = vmatprep.subr.mxu0 0.0
    %82 = vmatpush1.msra.mxu0 %v51
    %83 = vmatprep.subr.mxu0 0.0
    %84 = vmatpush1.msra.mxu0 %v52
    %85 = vmatprep.subr.mxu0 0.0
    %86 = vmatpush1.msra.mxu0 %v53
    %87 = vmatprep.subr.mxu0 0.0
    %88 = vmatpush1.msra.mxu0 %v54
    %89 = vmatprep.subr.mxu0 0.0
    %90 = vmatpush1.msra.mxu0 %v55
    %91 = vmatprep.subr.mxu0 0.0
    %92 = vmatpush1.msra.mxu0 %v56
    %93 = vmatprep.subr.mxu0 0.0
    %94 = vmatpush1.msra.mxu0 %v57
    %95 = vmatprep.subr.mxu0 0.0
    %96 = vmatpush1.msra.mxu0 0.0
    %97 = vmatprep.subr.mxu0 0.0
    %98 = vmatpush1.msra.mxu0 0.0
    %99 = vmatprep.subr.mxu0 0.0
    %100 = vmatpush1.msra.mxu0 0.0
    %101 = vmatprep.subr.mxu0 0.0
    %102 = vmatpush1.msra.mxu0 0.0
    %103 = vmatprep.subr.mxu0 0.0
    %104 = vmatpush1.msra.mxu0 0.0
    %105 = vmatprep.subr.mxu0 0.0
    %106 = vmatpush1.msra.mxu0 0.0
    %107 = vmatprep.subr.mxu0 0.0
    %108 = vmatpush1.msra.mxu0 0.0
    %109 = vmatprep.subr.mxu0 0.0
    %110 = vmatpush1.msra.mxu0 0.0
    %111 = vmatprep.subr.mxu0 0.0
    %112 = vmatpush1.msra.mxu0 0.0
    %113 = vmatprep.subr.mxu0 0.0
    %114 = vmatpush1.msra.mxu0 0.0
    %115 = vmatprep.subr.mxu0 0.0
    %116 = vmatpush1.msra.mxu0 0.0
    %117 = vmatprep.subr.mxu0 0.0
    %118 = vmatpush1.msra.mxu0 0.0
    %119 = vmatprep.subr.mxu0 0.0
    %120 = vmatpush1.msra.mxu0 0.0
    %121 = vmatprep.subr.mxu0 0.0
    %122 = vmatpush1.msra.mxu0 0.0
    %123 = vmatprep.subr.mxu0 0.0
    %124 = vmatpush1.msra.mxu0 0.0
    %125 = vmatprep.subr.mxu0 0.0
    %126 = vmatpush1.msra.mxu0 0.0
    %127 = vmatprep.mubr.f32.mxu0 0.0
    %128 = vmatmul.mubr.f32.gmra.mrb[0].mxu0 %v41
    %v129 = vpop.f32.mrb[0].mxu0
    %v130 = vadd.f32 %v62, %v129
    %v131 = vpop.f32.mrb[0].mxu0
    %132 = vdwg.mxu0
    %v133 = vmul.f32 %v130, 0.5
    %v134 = vtanh.pop %v133
    %v135 = vmul.f32 %v134, 0.5
    %v136 = vadd.f32 %v135, 0.5
    %s137 = scalar_lea.vmem [#allocation5], 128
    %v138 = vld [vmem:[%s137] sm:$0xff]
    %v139 = vld [vmem:[%s137 + $0x8] sm:$0xff]
    %v140 = vld [vmem:[%s137 + $0x10] sm:$0xff]
    %v141 = vld [vmem:[%s137 + $0x18] sm:$0xff]
    %v142 = vld [vmem:[%s137 + $0x20] sm:$0xff]
    %v143 = vld [vmem:[%s137 + $0x28] sm:$0xff]
    %v144 = vld [vmem:[%s137 + $0x30] sm:$0xff]
    %v145 = vld [vmem:[%s137 + $0x38] sm:$0xff]
    %v146 = vld [vmem:[%s137 + $0x40] sm:$0xff]
    %v147 = vld [vmem:[%s137 + $0x48] sm:$0xff]
    %v148 = vld [vmem:[%s137 + $0x50] sm:$0xff]
    %v149 = vld [vmem:[%s137 + $0x58] sm:$0xff]
    %v150 = vld [vmem:[%s137 + $0x60] sm:$0xff]
    %v151 = vld [vmem:[%s137 + $0x68] sm:$0xff]
    %v152 = vld [vmem:[%s137 + $0x70] sm:$0xff]
    %v153 = vld [vmem:[%s137 + $0x78] sm:$0xff]
    %v154 = vld [vmem:[%s2 + $0x1] sm:$0x1]
    %v155 = vlaneseq
    %v156 = vshrl.u32 %v155, 7
    %v157 = vsub.s32 0, %v156
    %v158 = vrot.slane %v154, %v157
    %159 = vmatprep.subr.mxu0 0.0
    %160 = vmatpush1.msra.mxu0 %v138
    %161 = vmatprep.subr.mxu0 0.0
    %162 = vmatpush1.msra.mxu0 %v139
    %163 = vmatprep.subr.mxu0 0.0
    %164 = vmatpush1.msra.mxu0 %v140
    %165 = vmatprep.subr.mxu0 0.0
    %166 = vmatpush1.msra.mxu0 %v141
    %167 = vmatprep.subr.mxu0 0.0
    %168 = vmatpush1.msra.mxu0 %v142
    %169 = vmatprep.subr.mxu0 0.0
    %170 = vmatpush1.msra.mxu0 %v143
    %171 = vmatprep.subr.mxu0 0.0
    %172 = vmatpush1.msra.mxu0 %v144
    %173 = vmatprep.subr.mxu0 0.0
    %174 = vmatpush1.msra.mxu0 %v145
    %175 = vmatprep.subr.mxu0 0.0
    %176 = vmatpush1.msra.mxu0 %v146
    %177 = vmatprep.subr.mxu0 0.0
    %178 = vmatpush1.msra.mxu0 %v147
    %179 = vmatprep.subr.mxu0 0.0
    %180 = vmatpush1.msra.mxu0 %v148
    %181 = vmatprep.subr.mxu0 0.0
    %182 = vmatpush1.msra.mxu0 %v149
    %183 = vmatprep.subr.mxu0 0.0
    %184 = vmatpush1.msra.mxu0 %v150
    %185 = vmatprep.subr.mxu0 0.0
    %186 = vmatpush1.msra.mxu0 %v151
    %187 = vmatprep.subr.mxu0 0.0
    %188 = vmatpush1.msra.mxu0 %v152
    %189 = vmatprep.subr.mxu0 0.0
    %190 = vmatpush1.msra.mxu0 %v153
    %191 = vmatprep.subr.mxu0 0.0
    %192 = vmatpush1.msra.mxu0 0.0
    %193 = vmatprep.subr.mxu0 0.0
    %194 = vmatpush1.msra.mxu0 0.0
    %195 = vmatprep.subr.mxu0 0.0
    %196 = vmatpush1.msra.mxu0 0.0
    %197 = vmatprep.subr.mxu0 0.0
    %198 = vmatpush1.msra.mxu0 0.0
    %199 = vmatprep.subr.mxu0 0.0
    %200 = vmatpush1.msra.mxu0 0.0
    %201 = vmatprep.subr.mxu0 0.0
    %202 = vmatpush1.msra.mxu0 0.0
    %203 = vmatprep.subr.mxu0 0.0
    %204 = vmatpush1.msra.mxu0 0.0
    %205 = vmatprep.subr.mxu0 0.0
    %206 = vmatpush1.msra.mxu0 0.0
    %207 = vmatprep.subr.mxu0 0.0
    %208 = vmatpush1.msra.mxu0 0.0
    %209 = vmatprep.subr.mxu0 0.0
    %210 = vmatpush1.msra.mxu0 0.0
    %211 = vmatprep.subr.mxu0 0.0
    %212 = vmatpush1.msra.mxu0 0.0
    %213 = vmatprep.subr.mxu0 0.0
    %214 = vmatpush1.msra.mxu0 0.0
    %215 = vmatprep.subr.mxu0 0.0
    %216 = vmatpush1.msra.mxu0 0.0
    %217 = vmatprep.subr.mxu0 0.0
    %218 = vmatpush1.msra.mxu0 0.0
    %219 = vmatprep.subr.mxu0 0.0
    %220 = vmatpush1.msra.mxu0 0.0
    %221 = vmatprep.subr.mxu0 0.0
    %222 = vmatpush1.msra.mxu0 0.0
    %223 = vmatprep.mubr.f32.mxu0 0.0
    %224 = vmatmul.mubr.f32.gmra.mrb[0].mxu0 %v136
    %v225 = vpop.f32.mrb[0].mxu0
    %v226 = vadd.f32 %v158, %v225
    %v227 = vpop.f32.mrb[0].mxu0
    %228 = vdwg.mxu0
    %v229 = vmul.f32 %v226, 0.5
    %v230 = vtanh.pop %v229
    %v231 = vmul.f32 %v230, 0.5
    %v232 = vadd.f32 %v231, 0.5
    %s233 = scalar_lea.vmem [#allocation5], 256
    %v234 = vld [vmem:[%s233] sm:$0xff]
    %v235 = vld [vmem:[%s233 + $0x8] sm:$0xff]
    %v236 = vld [vmem:[%s233 + $0x10] sm:$0xff]
    %v237 = vld [vmem:[%s233 + $0x18] sm:$0xff]
    %v238 = vld [vmem:[%s233 + $0x20] sm:$0xff]
    %v239 = vld [vmem:[%s233 + $0x28] sm:$0xff]
    %v240 = vld [vmem:[%s233 + $0x30] sm:$0xff]
    %v241 = vld [vmem:[%s233 + $0x38] sm:$0xff]
    %v242 = vld [vmem:[%s233 + $0x40] sm:$0xff]
    %v243 = vld [vmem:[%s233 + $0x48] sm:$0xff]
    %v244 = vld [vmem:[%s233 + $0x50] sm:$0xff]
    %v245 = vld [vmem:[%s233 + $0x58] sm:$0xff]
    %v246 = vld [vmem:[%s233 + $0x60] sm:$0xff]
    %v247 = vld [vmem:[%s233 + $0x68] sm:$0xff]
    %v248 = vld [vmem:[%s233 + $0x70] sm:$0xff]
    %v249 = vld [vmem:[%s233 + $0x78] sm:$0xff]
    %v250 = vld [vmem:[%s2 + $0x2] sm:$0x1]
    %v251 = vlaneseq
    %v252 = vshrl.u32 %v251, 7
    %v253 = vsub.s32 0, %v252
    %v254 = vrot.slane %v250, %v253
    %255 = vmatprep.subr.mxu0 0.0
    %256 = vmatpush1.msra.mxu0 %v234
    %257 = vmatprep.subr.mxu0 0.0
    %258 = vmatpush1.msra.mxu0 %v235
    %259 = vmatprep.subr.mxu0 0.0
    %260 = vmatpush1.msra.mxu0 %v236
    %261 = vmatprep.subr.mxu0 0.0
    %262 = vmatpush1.msra.mxu0 %v237
    %263 = vmatprep.subr.mxu0 0.0
    %264 = vmatpush1.msra.mxu0 %v238
    %265 = vmatprep.subr.mxu0 0.0
    %266 = vmatpush1.msra.mxu0 %v239
    %267 = vmatprep.subr.mxu0 0.0
    %268 = vmatpush1.msra.mxu0 %v240
    %269 = vmatprep.subr.mxu0 0.0
    %270 = vmatpush1.msra.mxu0 %v241
    %271 = vmatprep.subr.mxu0 0.0
    %272 = vmatpush1.msra.mxu0 %v242
    %273 = vmatprep.subr.mxu0 0.0
    %274 = vmatpush1.msra.mxu0 %v243
    %275 = vmatprep.subr.mxu0 0.0
    %276 = vmatpush1.msra.mxu0 %v244
    %277 = vmatprep.subr.mxu0 0.0
    %278 = vmatpush1.msra.mxu0 %v245
    %279 = vmatprep.subr.mxu0 0.0
    %280 = vmatpush1.msra.mxu0 %v246
    %281 = vmatprep.subr.mxu0 0.0
    %282 = vmatpush1.msra.mxu0 %v247
    %283 = vmatprep.subr.mxu0 0.0
    %284 = vmatpush1.msra.mxu0 %v248
    %285 = vmatprep.subr.mxu0 0.0
    %286 = vmatpush1.msra.mxu0 %v249
    %287 = vmatprep.subr.mxu0 0.0
    %288 = vmatpush1.msra.mxu0 0.0
    %289 = vmatprep.subr.mxu0 0.0
    %290 = vmatpush1.msra.mxu0 0.0
    %291 = vmatprep.subr.mxu0 0.0
    %292 = vmatpush1.msra.mxu0 0.0
    %293 = vmatprep.subr.mxu0 0.0
    %294 = vmatpush1.msra.mxu0 0.0
    %295 = vmatprep.subr.mxu0 0.0
    %296 = vmatpush1.msra.mxu0 0.0
    %297 = vmatprep.subr.mxu0 0.0
    %298 = vmatpush1.msra.mxu0 0.0
    %299 = vmatprep.subr.mxu0 0.0
    %300 = vmatpush1.msra.mxu0 0.0
    %301 = vmatprep.subr.mxu0 0.0
    %302 = vmatpush1.msra.mxu0 0.0
    %303 = vmatprep.subr.mxu0 0.0
    %304 = vmatpush1.msra.mxu0 0.0
    %305 = vmatprep.subr.mxu0 0.0
    %306 = vmatpush1.msra.mxu0 0.0
    %307 = vmatprep.subr.mxu0 0.0
    %308 = vmatpush1.msra.mxu0 0.0
    %309 = vmatprep.subr.mxu0 0.0
    %310 = vmatpush1.msra.mxu0 0.0
    %311 = vmatprep.subr.mxu0 0.0
    %312 = vmatpush1.msra.mxu0 0.0
    %313 = vmatprep.subr.mxu0 0.0
    %314 = vmatpush1.msra.mxu0 0.0
    %315 = vmatprep.subr.mxu0 0.0
    %316 = vmatpush1.msra.mxu0 0.0
    %317 = vmatprep.subr.mxu0 0.0
    %318 = vmatpush1.msra.mxu0 0.0
    %319 = vmatprep.mubr.f32.mxu0 0.0
    %320 = vmatmul.mubr.f32.gmra.mrb[0].mxu0 %v232
    %v321 = vpop.f32.mrb[0].mxu0
    %v322 = vadd.f32 %v254, %v321
    %v323 = vpop.f32.mrb[0].mxu0
    %324 = vdwg.mxu0
    %325 = vst [vmem:[#allocation7] sm:$0xff] %v322
    // Predicated region
    $region22: #{tpu_custom_call.1} parent=1 // pred_check
      _
    $region23: #{tpu_custom_call.1} parent=1 // pred_check_branch
      %327 = sbr.rel (0) target = $region25
    $region24: #{tpu_custom_call.1} parent=1 // pred_region
      %s329 = ssub.s32 128, 128
      %330 = vsyncadd [#allocation4], %s329
      %s332 = sshll.u32 [#allocation7], 4
      %s333 = int_to_ptr.vmem [resolvable:$true] %s332
      %335 = dma.vmem_to_hbm [thread:$0]  %s333, 128, %s3, [#allocation4]
    $region25: #{tpu_custom_call.1} parent=1 // pred_fallthru
      _
    // Predicated region
    $region26: #{tpu_custom_call.1} parent=1 // pred_check
      _
    $region27: #{tpu_custom_call.1} parent=1 // pred_check_branch
      %337 = sbr.rel (0) target = $region29
    $region28: #{tpu_custom_call.1} parent=1 // pred_region
      %338 = dma.done [#allocation4], 128
    $region29: #{tpu_custom_call.1} parent=1 // pred_fallthru
      _
    %339 = vsyncpa [#allocation3], 1
    %340 = vsyncpa [#allocation6], 1
    %341 = vsyncpa [#allocation4], 1

</llo_original>
